<compile_context>
chip_gen: v6e
topology: v6e:2x2x1
jax: 0.10.0
libtpu: 0.0.40
codegen_flags: <defaults>
</compile_context>

<pallas_src>
import jax
import jax.numpy as jnp
from jax.experimental import pallas as pl
from jax.experimental.pallas import tpu as pltpu


def _round_up(x, m):
    return ((x + m - 1) // m) * m


def critic_kernel(x_ref, w1_ref, b1_ref, w2_ref, b2_ref, o_ref):
    # fc_1 on the MXU: (TILE_B, in_dim) @ (in_dim, H) -> (TILE_B, H), f32 accumulate.
    h = jnp.dot(x_ref[...], w1_ref[...], preferred_element_type=jnp.float32)
    h = h + b1_ref[...]                        # (1, H) bias broadcasts over rows
    # LeakyReLU(negative_slope=0.05): maximum form (vmul+vmax, fewer VALU slots).
    h = jnp.maximum(h, 0.05 * h)
    # fc_2 (out_features = 1) as VPU multiply + cross-lane (XLU) reduction; MXU free.
    red = jnp.sum(h * w2_ref[...], axis=-1, keepdims=True)     # (TILE_B, 1)
    # b2 is a scalar living in SMEM; add after the reduction. Store the column block
    # directly -- no sublane->lane relayout (output is 32x smaller than the input).
    o_ref[...] = (red + b2_ref[0, 0]).astype(o_ref.dtype)


def _choose_tile_b(batch):
    """Pick the batch tile.

    * B <= 256: single grid step, only round up to the 8-sublane granule.
    * Larger B: ~half the batch (rounded to 128) so the "parallel" grid has >= 2
      steps for v7x's two TensorCores, capped at 8192 rows (x tile <= 1 MiB f32 /
      0.5 MiB bf16; hidden intermediate <= 4 MiB f32) to stay well inside the
      default scoped VMEM on all of v5e/v6e/v7x while amortizing per-step overhead.
    """
    if batch <= 256:
        return _round_up(batch, 8)
    half = _round_up(pl.cdiv(batch, 2), 128)
    return min(8192, half)


def critic_forward(x, w1, b1, w2, b2, *, compute_dtype=None, tile_b=None):
    """Forward pass of Critic.

    x : (B, in_dim) float32
    w1: (in_dim, H)   (pre-transposed vs. PyTorch's (H, in_dim))
    b1: (1, H)
    w2: (H, 1)
    b2: (1, 1)
    Returns (B, 1) float32.

    compute_dtype:
      None (default)  -> bf16 fc_1 matmul inputs (f32 accumulate) when B >= 1024,
                         exact f32 otherwise. bf16 path tolerance is ~1e-2 relative
                         vs. PyTorch f32 numerics; HBM bytes for x are halved
                         (best when x already arrives in bf16 or the cast fuses
                         with its upstream producer).
      jnp.float32 / jnp.bfloat16 -> force that path.
    """
    B, in_dim = x.shape
    H = w1.shape[1]

    if compute_dtype is None:
        compute_dtype = jnp.bfloat16 if B >= 1024 else jnp.float32

    tile = tile_b if tile_b is not None else _choose_tile_b(B)
    grid_steps = pl.cdiv(B, tile)       # ragged last block handled by Pallas; no jnp.pad

    x_c = x.astype(compute_dtype)
    w1_c = w1.astype(compute_dtype)
    b1_r = b1.reshape(1, H).astype(jnp.float32)
    w2_r = w2.reshape(1, H).astype(jnp.float32)   # second layer applied as a row vector
    b2_s = b2.reshape(1, 1).astype(jnp.float32)   # scalar -> SMEM

    # Deeper pipelining only pays when the x stream spans many grid steps.
    x_spec_kwargs = {}
    if grid_steps > 4:
        x_spec_kwargs["pipeline_mode"] = pl.Buffered(3)

    out = pl.pallas_call(
        critic_kernel,
        out_shape=jax.ShapeDtypeStruct((B, 1), jnp.float32),
        grid=(grid_steps,),
        in_specs=[
            # x: streamed per-tile, auto double-(or triple-)buffered.
            pl.BlockSpec((tile, in_dim), lambda i: (i, 0), **x_spec_kwargs),
            # weights/biases: constant index maps -> fetched once, resident in VMEM.
            pl.BlockSpec((in_dim, H), lambda i: (0, 0)),
            pl.BlockSpec((1, H), lambda i: (0, 0)),
            pl.BlockSpec((1, H), lambda i: (0, 0)),
            # b2: single scalar in SMEM.
            pl.BlockSpec(memory_space=pltpu.MemorySpace.SMEM),
        ],
        # (tile, 1) column block: only valid rows are written back, so the (B, 1)
        # output never contains padded-row garbage.
        out_specs=pl.BlockSpec((tile, 1), lambda i: (i, 0)),
        compiler_params=pltpu.CompilerParams(
            dimension_semantics=("parallel",),
        ),
    )(x_c, w1_c, b1_r, w2_r, b2_s)

    return out


def init_params(key, in_dim, hidd_dim):
    """Deterministic PyTorch-style uniform(-1/sqrt(fan_in), 1/sqrt(fan_in)) init."""
    k1, k2, k3, k4 = jax.random.split(key, 4)
    bound1 = 1.0 / jnp.sqrt(in_dim)
    bound2 = 1.0 / jnp.sqrt(hidd_dim)
    # Stored pre-transposed relative to PyTorch's (out_features, in_features).
    w1 = jax.random.uniform(k1, (in_dim, hidd_dim), jnp.float32, -bound1, bound1)
    b1 = jax.random.uniform(k2, (1, hidd_dim), jnp.float32, -bound1, bound1)
    w2 = jax.random.uniform(k3, (hidd_dim, 1), jnp.float32, -bound2, bound2)
    b2 = jax.random.uniform(k4, (1, 1), jnp.float32, -bound2, bound2)
    return w1, b1, w2, b2


if __name__ == "__main__":
    # Make the pure-JAX reference matmuls full f32 so the comparison is meaningful.
    jax.config.update("jax_default_matmul_precision", "highest")

    in_dim, hidd_dim = 32, 32
    key = jax.random.PRNGKey(0)
    kx, kp = jax.random.split(key)
    w1, b1, w2, b2 = init_params(kp, in_dim, hidd_dim)

    def reference(x):
        h = x @ w1 + b1
        h = jnp.where(h > 0, h, 0.05 * h)
        return h @ w2 + b2

    # Small batch (typical MADRL critic call): one 8-row block, no 128-padding, f32.
    x_small = jax.random.normal(kx, (8, in_dim), jnp.float32)
    out_small = jax.block_until_ready(critic_forward(x_small, w1, b1, w2, b2))
    assert out_small.shape == (8, 1)
    assert jnp.allclose(out_small, reference(x_small), atol=1e-4, rtol=1e-4)

    # Mid batch, not a tile multiple: ragged cdiv grid (2 steps, no jnp.pad), f32 path.
    x_mid = jax.random.normal(kx, (641, in_dim), jnp.float32)
    out_mid = jax.block_until_ready(
        critic_forward(x_mid, w1, b1, w2, b2, compute_dtype=jnp.float32))
    assert out_mid.shape == (641, 1)
    assert jnp.allclose(out_mid, reference(x_mid), atol=1e-4, rtol=1e-4)

    # Larger batch: default bf16 matmul inputs (f32 accumulate), 2-step parallel grid
    # (both v7x TensorCores), ragged last block. Looser tolerance per bf16 contract.
    x_big = jax.random.normal(kx, (1500, in_dim), jnp.float32)
    out_big = jax.block_until_ready(critic_forward(x_big, w1, b1, w2, b2))
    assert out_big.shape == (1500, 1)
    assert jnp.allclose(out_big, reference(x_big), atol=3e-2, rtol=3e-2)

    print("KERNEL_OK")
</pallas_src>

<mosaic_0001>
module attributes {stable_mosaic.version = 11 : i64} {
  func.func @critic_kernel(%arg0: i32, %arg1: memref<8x32xf32, #tpu.memory_space<vmem>>, %arg2: memref<32x32xf32, #tpu.memory_space<vmem>>, %arg3: memref<1x32xf32, #tpu.memory_space<vmem>>, %arg4: memref<1x32xf32, #tpu.memory_space<vmem>>, %arg5: memref<1x1xf32, #tpu.memory_space<smem>>, %arg6: memref<8x1xf32, #tpu.memory_space<vmem>>) attributes {dimension_semantics = [#tpu.dimension_semantics<parallel>], iteration_bounds = array<i64: 1>, scalar_prefetch = 0 : i64, scratch_operands = 0 : i64, tpu.core_type = #tpu.core_type<tc>, window_params = [{transform_indices = @transform_0, window_bounds = array<i64: 8, 32>}, {pipeline_mode = #tpu.pipeline_mode<synchronous>, transform_indices = @transform_1, window_bounds = array<i64: 32, 32>}, {pipeline_mode = #tpu.pipeline_mode<synchronous>, transform_indices = @transform_2, window_bounds = array<i64: 1, 32>}, {pipeline_mode = #tpu.pipeline_mode<synchronous>, transform_indices = @transform_3, window_bounds = array<i64: 1, 32>}, {transform_indices = @transform_4, window_bounds = array<i64: 1, 1>}, {transform_indices = @transform_5, window_bounds = array<i64: 8, 1>}]} {
    %c0 = arith.constant 0 : index
    %c0_0 = arith.constant 0 : index
    %0 = vector.load %arg1[%c0, %c0_0] : memref<8x32xf32, #tpu.memory_space<vmem>>, vector<8x32xf32>
    %c0_1 = arith.constant 0 : index
    %c0_2 = arith.constant 0 : index
    %1 = vector.load %arg2[%c0_1, %c0_2] : memref<32x32xf32, #tpu.memory_space<vmem>>, vector<32x32xf32>
    %cst = arith.constant dense<0.000000e+00> : vector<8x32xf32>
    %2 = tpu.matmul %0, %1, %cst {dimension_numbers = #tpu.dot_dimension_numbers<[1], [0], [0], [1], [0, 0, 1, 1], [], []>, precision = #tpu.contract_precision<fp32>} : vector<8x32xf32>, vector<32x32xf32>, vector<8x32xf32> -> vector<8x32xf32>
    %c0_3 = arith.constant 0 : index
    %c0_4 = arith.constant 0 : index
    %3 = vector.load %arg3[%c0_3, %c0_4] : memref<1x32xf32, #tpu.memory_space<vmem>>, vector<1x32xf32>
    %4 = vector.broadcast %3 : vector<1x32xf32> to vector<8x32xf32>
    %5 = arith.addf %2, %4 : vector<8x32xf32>
    %cst_5 = arith.constant 5.000000e-02 : f32
    %6 = vector.broadcast %cst_5 : f32 to vector<8x32xf32>
    %7 = arith.mulf %6, %5 : vector<8x32xf32>
    %8 = arith.maximumf %5, %7 : vector<8x32xf32>
    %c0_6 = arith.constant 0 : index
    %c0_7 = arith.constant 0 : index
    %9 = vector.load %arg4[%c0_6, %c0_7] : memref<1x32xf32, #tpu.memory_space<vmem>>, vector<1x32xf32>
    %10 = vector.broadcast %9 : vector<1x32xf32> to vector<8x32xf32>
    %11 = arith.mulf %8, %10 : vector<8x32xf32>
    %cst_8 = arith.constant dense<0.000000e+00> : vector<8xf32>
    %12 = vector.multi_reduction <add>, %11, %cst_8 [1] : vector<8x32xf32> to vector<8xf32>
    %13 = vector.shape_cast %12 : vector<8xf32> to vector<8x1xf32>
    %c0_9 = arith.constant 0 : index
    %c0_10 = arith.constant 0 : index
    %14 = memref.load %arg5[%c0_9, %c0_10] : memref<1x1xf32, #tpu.memory_space<smem>>
    %15 = vector.broadcast %14 : f32 to vector<8x1xf32>
    %16 = arith.addf %13, %15 : vector<8x1xf32>
    %c0_11 = arith.constant 0 : index
    %c0_12 = arith.constant 0 : index
    %17 = vector.load %arg6[%c0_11, %c0_12] : memref<8x1xf32, #tpu.memory_space<vmem>>, vector<8x1xf32>
    tpu.vector_store %arg6[%c0_11, %c0_12], %16 {strides = array<i32>} : memref<8x1xf32, #tpu.memory_space<vmem>>, vector<8x1xf32>,
    return
  }
  func.func @transform_0(%arg0: i32) -> (i32, i32) {
    %c0_i32 = arith.constant 0 : i32
    %c0_i32_0 = arith.constant 0 : i32
    return %arg0, %c0_i32 : i32, i32
  }
  func.func @transform_1(%arg0: i32) -> (i32, i32) {
    %c0_i32 = arith.constant 0 : i32
    %c0_i32_0 = arith.constant 0 : i32
    %c0_i32_1 = arith.constant 0 : i32
    return %c0_i32, %c0_i32_0 : i32, i32
  }
  func.func @transform_2(%arg0: i32) -> (i32, i32) {
    %c0_i32 = arith.constant 0 : i32
    %c0_i32_0 = arith.constant 0 : i32
    %c0_i32_1 = arith.constant 0 : i32
    return %c0_i32, %c0_i32_0 : i32, i32
  }
  func.func @transform_3(%arg0: i32) -> (i32, i32) {
    %c0_i32 = arith.constant 0 : i32
    %c0_i32_0 = arith.constant 0 : i32
    %c0_i32_1 = arith.constant 0 : i32
    return %c0_i32, %c0_i32_0 : i32, i32
  }
  func.func @transform_4(%arg0: i32) -> (i32, i32) {
    %c0_i32 = arith.constant 0 : i32
    %c0_i32_0 = arith.constant 0 : i32
    %c0_i32_1 = arith.constant 0 : i32
    return %c0_i32, %c0_i32_0 : i32, i32
  }
  func.func @transform_5(%arg0: i32) -> (i32, i32) {
    %c0_i32 = arith.constant 0 : i32
    %c0_i32_0 = arith.constant 0 : i32
    return %arg0, %c0_i32 : i32, i32
  }
}

</mosaic_0001>

<llo_original>
// kernel: tpu_custom_call.1
$region0: #{tpu_custom_call.1}
  #allocation0 [shape = 'u32[]', space=smem, size = 0x4, offset = 0x4, fixed_abs, tag = 'smem constant byte address 0x4 - core index']
  #allocation1 [shape = 'u32[144,128]{1,0:T(1,128)}', space=vmem, size = 0x12000, scoped, tag = 'internal scratch']
  #allocation2 [shape = 'f32[1,1]{1,0:T(1,128)S(6)}', space=smem, size = 0x200, scoped, tag = 'scoped memory for tpu_custom_call.1']
  %s0 = inlined_call_operand.hbm [shape: f32[8,32], index: 0, kind: input, shape index: {}]
  %s1 = inlined_call_operand.hbm [shape: f32[32,32], index: 1, kind: input, shape index: {}]
  %s2 = inlined_call_operand.vmem [shape: f32[1,32], index: 2, kind: input, shape index: {}]
  %s3 = inlined_call_operand.vmem [shape: f32[1,32], index: 3, kind: input, shape index: {}]
  %s4 = inlined_call_operand.<no memory space> [shape: f32[1,1], index: 4, kind: input, shape index: {}]
  %s5 = inlined_call_operand.vmem [shape: f32[8,1], index: 5, kind: output, shape index: {}]
  %s6 = sld [smem:[#allocation0]]
  $region38: #{tpu_custom_call.1} parent=0
    _
  %s8 = ssub.s32 1, %s6
  %s9 = scalar_select 0, %s8, %s6
  %10 = sst [smem:[#allocation2]] %s4
  $region1: #{tpu_custom_call.1} parent=0
    #allocation3 [shape = 'u8[4096]{0}', space=vmem, size = 0x1000, scoped, tag = 'input window, operand 0, single buffered']
    #allocation4 [shape = 's32[1]{0}', space=sflag, size = 0x4, scoped, tag = 'scoped memory for tpu_custom_call.1']
    #allocation5 [shape = 'u8[16384]{0}', space=vmem, size = 0x4000, scoped, tag = 'input window, operand 1, single buffered']
    #allocation6 [shape = 's32[1]{0}', space=sflag, size = 0x4, scoped, tag = 'scoped memory for tpu_custom_call.1']
    %11 = vsyncpa [#allocation4], 0
    %12 = vsyncpa [#allocation6], 0
    // Predicated region
    $region2: #{tpu_custom_call.1} parent=1 // pred_check
      _
    $region3: #{tpu_custom_call.1} parent=1 // pred_check_branch
      %14 = sbr.rel (0) target = $region5
    $region4: #{tpu_custom_call.1} parent=1 // pred_region
      %s16 = ssub.s32 128, 128
      %17 = vsyncadd [#allocation4], %s16
      %s19 = sshll.u32 [#allocation3], 4
      %s20 = int_to_ptr.vmem [resolvable:$true] %s19
      %22 = dma.hbm_to_vmem [thread:$0]  %s0, 128, %s20, [#allocation4]
    $region5: #{tpu_custom_call.1} parent=1 // pred_fallthru
      _
    // Predicated region
    $region6: #{tpu_custom_call.1} parent=1 // pred_check
      _
    $region7: #{tpu_custom_call.1} parent=1 // pred_check_branch
      %24 = sbr.rel (0) target = $region9
    $region8: #{tpu_custom_call.1} parent=1 // pred_region
      %s26 = ssub.s32 512, 512
      %27 = vsyncadd [#allocation6], %s26
      %s28 = sshll.u32 [#allocation5], 4
      %s29 = int_to_ptr.vmem [resolvable:$true] %s28
      %34 = dma.hbm_to_vmem [thread:$0]  %s1, 512, %s29, [#allocation6], 128, 128, 8
    $region9: #{tpu_custom_call.1} parent=1 // pred_fallthru
      _
    // Predicated region
    $region10: #{tpu_custom_call.1} parent=1 // pred_check
      _
    $region11: #{tpu_custom_call.1} parent=1 // pred_check_branch
      %36 = sbr.rel (0) target = $region13
    $region12: #{tpu_custom_call.1} parent=1 // pred_region
      _
    $region13: #{tpu_custom_call.1} parent=1 // pred_fallthru
      _
    // Predicated region
    $region14: #{tpu_custom_call.1} parent=1 // pred_check
      _
    $region15: #{tpu_custom_call.1} parent=1 // pred_check_branch
      %38 = sbr.rel (0) target = $region17
    $region16: #{tpu_custom_call.1} parent=1 // pred_region
      _
    $region17: #{tpu_custom_call.1} parent=1 // pred_fallthru
      _
    // Predicated region
    $region18: #{tpu_custom_call.1} parent=1 // pred_check
      _
    $region19: #{tpu_custom_call.1} parent=1 // pred_check_branch
      %40 = sbr.rel (0) target = $region21
    $region20: #{tpu_custom_call.1} parent=1 // pred_region
      _
    $region21: #{tpu_custom_call.1} parent=1 // pred_fallthru
      _
    // Predicated region
    $region22: #{tpu_custom_call.1} parent=1 // pred_check
      _
    $region23: #{tpu_custom_call.1} parent=1 // pred_check_branch
      %42 = sbr.rel (0) target = $region25
    $region24: #{tpu_custom_call.1} parent=1 // pred_region
      %43 = dma.done [#allocation4], 128
    $region25: #{tpu_custom_call.1} parent=1 // pred_fallthru
      _
    // Predicated region
    $region26: #{tpu_custom_call.1} parent=1 // pred_check
      _
    $region27: #{tpu_custom_call.1} parent=1 // pred_check_branch
      %45 = sbr.rel (0) target = $region29
    $region28: #{tpu_custom_call.1} parent=1 // pred_region
      %46 = dma.done [#allocation6], 512
    $region29: #{tpu_custom_call.1} parent=1 // pred_fallthru
      _
    %v47 = vld [vmem:[#allocation3] sm:$0xff]
    %v48 = vld [vmem:[#allocation5] sm:$0xff]
    %v49 = vld [vmem:[#allocation5 + $0x8] sm:$0xff]
    %v50 = vld [vmem:[#allocation5 + $0x10] sm:$0xff]
    %v51 = vld [vmem:[#allocation5 + $0x18] sm:$0xff]
    %v52 = vld [vmem:[%s2] sm:$0x1]
    %v54 = vlaneseq
    %v55 = vshrl.u32 %v54, 7
    %v56 = vsub.s32 0, %v55
    %v57 = vrot.slane %v52, %v56
    %vm59 = vcmask 261120
    %v61 = vsel %vm59, %v47, 0
    %63 = vmatprep.subr.mxu0 0.0
    %64 = vmatpush1.msra.mxu0 0.0
    %65 = vmatprep.subr.mxu0 0.0
    %66 = vmatpush1.msra.mxu0 0.0
    %67 = vmatprep.subr.mxu0 0.0
    %68 = vmatpush1.msra.mxu0 0.0
    %69 = vmatprep.subr.mxu0 0.0
    %70 = vmatpush1.msra.mxu0 0.0
    %71 = vmatprep.subr.mxu0 0.0
    %72 = vmatpush1.msra.mxu0 0.0
    %73 = vmatprep.subr.mxu0 0.0
    %74 = vmatpush1.msra.mxu0 0.0
    %75 = vmatprep.subr.mxu0 0.0
    %76 = vmatpush1.msra.mxu0 0.0
    %77 = vmatprep.subr.mxu0 0.0
    %78 = vmatpush1.msra.mxu0 0.0
    %79 = vmatprep.subr.mxu0 0.0
    %80 = vmatpush1.msra.mxu0 0.0
    %81 = vmatprep.subr.mxu0 0.0
    %82 = vmatpush1.msra.mxu0 0.0
    %83 = vmatprep.subr.mxu0 0.0
    %84 = vmatpush1.msra.mxu0 0.0
    %85 = vmatprep.subr.mxu0 0.0
    %86 = vmatpush1.msra.mxu0 0.0
    %87 = vmatprep.subr.mxu0 0.0
    %v88 = vand.u32 %v51, 4294901760
    %89 = vmatpush1.msra.mxu0 %v88
    %90 = vmatprep.subr.mxu0 0.0
    %v91 = vand.u32 %v50, 4294901760
    %92 = vmatpush1.msra.mxu0 %v91
    %93 = vmatprep.subr.mxu0 0.0
    %v94 = vand.u32 %v49, 4294901760
    %95 = vmatpush1.msra.mxu0 %v94
    %96 = vmatprep.subr.mxu0 0.0
    %v97 = vand.u32 %v48, 4294901760
    %98 = vmatpush1.msra.mxu0 %v97
    %99 = vmatprep.subr.mxu0 0.0
    %100 = vmatpush2.msra.mxu0 0.0
    %101 = vmatprep.subr.mxu0 0.0
    %102 = vmatpush2.msra.mxu0 0.0
    %103 = vmatprep.subr.mxu0 0.0
    %104 = vmatpush2.msra.mxu0 0.0
    %105 = vmatprep.subr.mxu0 0.0
    %106 = vmatpush2.msra.mxu0 0.0
    %107 = vmatprep.subr.mxu0 0.0
    %108 = vmatpush2.msra.mxu0 0.0
    %109 = vmatprep.subr.mxu0 0.0
    %110 = vmatpush2.msra.mxu0 0.0
    %111 = vmatprep.subr.mxu0 0.0
    %112 = vmatpush2.msra.mxu0 0.0
    %113 = vmatprep.subr.mxu0 0.0
    %114 = vmatpush2.msra.mxu0 0.0
    %115 = vmatprep.subr.mxu0 0.0
    %116 = vmatpush2.msra.mxu0 0.0
    %117 = vmatprep.subr.mxu0 0.0
    %118 = vmatpush2.msra.mxu0 0.0
    %119 = vmatprep.subr.mxu0 0.0
    %120 = vmatpush2.msra.mxu0 0.0
    %121 = vmatprep.subr.mxu0 0.0
    %122 = vmatpush2.msra.mxu0 0.0
    %123 = vmatprep.subr.mxu0 0.0
    %124 = vmatpush2.msra.mxu0 0.0
    %125 = vmatprep.subr.mxu0 0.0
    %126 = vmatpush2.msra.mxu0 0.0
    %127 = vmatprep.subr.mxu0 0.0
    %128 = vmatpush2.msra.mxu0 0.0
    %129 = vmatprep.subr.mxu0 0.0
    %130 = vmatpush2.msra.mxu0 0.0
    %131 = vmatprep.mubr.f32.mxu0 0.0
    %v132 = vand.u32 %v61, 4294901760
    %v133 = vsub.f32 %v61, %v132
    %v134 = vand.u32 %v133, 4294901760
    %v135 = vsub.f32 %v133, %v134
    %v136 = vand.u32 %v135, 4294901760
    %137 = vmatmul.mubr.f32.gmra.mxu0 %v136
    %v138 = vpop.f32.mrf.mxu0
    %v139 = vadd.f32 %v57, %v138
    %v140 = vpop.f32.mrf.mxu0
    %141 = vdwg.mxu0
    %142 = vmatprep.subr.mxu0 0.0
    %143 = vmatpush1.msra.mxu0 0.0
    %144 = vmatprep.subr.mxu0 0.0
    %145 = vmatpush1.msra.mxu0 0.0
    %146 = vmatprep.subr.mxu0 0.0
    %147 = vmatpush1.msra.mxu0 0.0
    %148 = vmatprep.subr.mxu0 0.0
    %149 = vmatpush1.msra.mxu0 0.0
    %150 = vmatprep.subr.mxu0 0.0
    %151 = vmatpush1.msra.mxu0 0.0
    %152 = vmatprep.subr.mxu0 0.0
    %153 = vmatpush1.msra.mxu0 0.0
    %154 = vmatprep.subr.mxu0 0.0
    %155 = vmatpush1.msra.mxu0 0.0
    %156 = vmatprep.subr.mxu0 0.0
    %157 = vmatpush1.msra.mxu0 0.0
    %158 = vmatprep.subr.mxu0 0.0
    %159 = vmatpush1.msra.mxu0 0.0
    %160 = vmatprep.subr.mxu0 0.0
    %161 = vmatpush1.msra.mxu0 0.0
    %162 = vmatprep.subr.mxu0 0.0
    %163 = vmatpush1.msra.mxu0 0.0
    %164 = vmatprep.subr.mxu0 0.0
    %165 = vmatpush1.msra.mxu0 0.0
    %166 = vmatprep.subr.mxu0 0.0
    %v167 = vand.u32 %v51, 4294901760
    %v168 = vsub.f32 %v51, %v167
    %v169 = vand.u32 %v168, 4294901760
    %v170 = vsub.f32 %v168, %v169
    %v171 = vand.u32 %v170, 4294901760
    %172 = vmatpush1.msra.mxu0 %v171
    %173 = vmatprep.subr.mxu0 0.0
    %v174 = vand.u32 %v50, 4294901760
    %v175 = vsub.f32 %v50, %v174
    %v176 = vand.u32 %v175, 4294901760
    %v177 = vsub.f32 %v175, %v176
    %v178 = vand.u32 %v177, 4294901760
    %179 = vmatpush1.msra.mxu0 %v178
    %180 = vmatprep.subr.mxu0 0.0
    %v181 = vand.u32 %v49, 4294901760
    %v182 = vsub.f32 %v49, %v181
    %v183 = vand.u32 %v182, 4294901760
    %v184 = vsub.f32 %v182, %v183
    %v185 = vand.u32 %v184, 4294901760
    %186 = vmatpush1.msra.mxu0 %v185
    %187 = vmatprep.subr.mxu0 0.0
    %v188 = vand.u32 %v48, 4294901760
    %v189 = vsub.f32 %v48, %v188
    %v190 = vand.u32 %v189, 4294901760
    %v191 = vsub.f32 %v189, %v190
    %v192 = vand.u32 %v191, 4294901760
    %193 = vmatpush1.msra.mxu0 %v192
    %194 = vmatprep.subr.mxu0 0.0
    %195 = vmatpush2.msra.mxu0 0.0
    %196 = vmatprep.subr.mxu0 0.0
    %197 = vmatpush2.msra.mxu0 0.0
    %198 = vmatprep.subr.mxu0 0.0
    %199 = vmatpush2.msra.mxu0 0.0
    %200 = vmatprep.subr.mxu0 0.0
    %201 = vmatpush2.msra.mxu0 0.0
    %202 = vmatprep.subr.mxu0 0.0
    %203 = vmatpush2.msra.mxu0 0.0
    %204 = vmatprep.subr.mxu0 0.0
    %205 = vmatpush2.msra.mxu0 0.0
    %206 = vmatprep.subr.mxu0 0.0
    %207 = vmatpush2.msra.mxu0 0.0
    %208 = vmatprep.subr.mxu0 0.0
    %209 = vmatpush2.msra.mxu0 0.0
    %210 = vmatprep.subr.mxu0 0.0
    %211 = vmatpush2.msra.mxu0 0.0
    %212 = vmatprep.subr.mxu0 0.0
    %213 = vmatpush2.msra.mxu0 0.0
    %214 = vmatprep.subr.mxu0 0.0
    %215 = vmatpush2.msra.mxu0 0.0
    %216 = vmatprep.subr.mxu0 0.0
    %217 = vmatpush2.msra.mxu0 0.0
    %218 = vmatprep.subr.mxu0 0.0
    %219 = vmatpush2.msra.mxu0 0.0
    %220 = vmatprep.subr.mxu0 0.0
    %221 = vmatpush2.msra.mxu0 0.0
    %222 = vmatprep.subr.mxu0 0.0
    %223 = vmatpush2.msra.mxu0 0.0
    %224 = vmatprep.subr.mxu0 0.0
    %225 = vmatpush2.msra.mxu0 0.0
    %226 = vmatprep.mubr.f32.mxu0 0.0
    %v227 = vand.u32 %v61, 4294901760
    %228 = vmatmul.mubr.f32.gmra.mxu0 %v227
    %v229 = vpop.f32.mrf.mxu0
    %v230 = vadd.f32 %v139, %v229
    %v231 = vpop.f32.mrf.mxu0
    %232 = vdwg.mxu0
    %233 = vmatprep.subr.mxu0 0.0
    %234 = vmatpush1.msra.mxu0 0.0
    %235 = vmatprep.subr.mxu0 0.0
    %236 = vmatpush1.msra.mxu0 0.0
    %237 = vmatprep.subr.mxu0 0.0
    %238 = vmatpush1.msra.mxu0 0.0
    %239 = vmatprep.subr.mxu0 0.0
    %240 = vmatpush1.msra.mxu0 0.0
    %241 = vmatprep.subr.mxu0 0.0
    %242 = vmatpush1.msra.mxu0 0.0
    %243 = vmatprep.subr.mxu0 0.0
    %244 = vmatpush1.msra.mxu0 0.0
    %245 = vmatprep.subr.mxu0 0.0
    %246 = vmatpush1.msra.mxu0 0.0
    %247 = vmatprep.subr.mxu0 0.0
    %248 = vmatpush1.msra.mxu0 0.0
    %249 = vmatprep.subr.mxu0 0.0
    %250 = vmatpush1.msra.mxu0 0.0
    %251 = vmatprep.subr.mxu0 0.0
    %252 = vmatpush1.msra.mxu0 0.0
    %253 = vmatprep.subr.mxu0 0.0
    %254 = vmatpush1.msra.mxu0 0.0
    %255 = vmatprep.subr.mxu0 0.0
    %256 = vmatpush1.msra.mxu0 0.0
    %257 = vmatprep.subr.mxu0 0.0
    %v258 = vand.u32 %v51, 4294901760
    %v259 = vsub.f32 %v51, %v258
    %260 = vmatpush1.msra.mxu0 %v259
    %261 = vmatprep.subr.mxu0 0.0
    %v262 = vand.u32 %v50, 4294901760
    %v263 = vsub.f32 %v50, %v262
    %264 = vmatpush1.msra.mxu0 %v263
    %265 = vmatprep.subr.mxu0 0.0
    %v266 = vand.u32 %v49, 4294901760
    %v267 = vsub.f32 %v49, %v266
    %268 = vmatpush1.msra.mxu0 %v267
    %269 = vmatprep.subr.mxu0 0.0
    %v270 = vand.u32 %v48, 4294901760
    %v271 = vsub.f32 %v48, %v270
    %272 = vmatpush1.msra.mxu0 %v271
    %273 = vmatprep.subr.mxu0 0.0
    %274 = vmatpush2.msra.mxu0 0.0
    %275 = vmatprep.subr.mxu0 0.0
    %276 = vmatpush2.msra.mxu0 0.0
    %277 = vmatprep.subr.mxu0 0.0
    %278 = vmatpush2.msra.mxu0 0.0
    %279 = vmatprep.subr.mxu0 0.0
    %280 = vmatpush2.msra.mxu0 0.0
    %281 = vmatprep.subr.mxu0 0.0
    %282 = vmatpush2.msra.mxu0 0.0
    %283 = vmatprep.subr.mxu0 0.0
    %284 = vmatpush2.msra.mxu0 0.0
    %285 = vmatprep.subr.mxu0 0.0
    %286 = vmatpush2.msra.mxu0 0.0
    %287 = vmatprep.subr.mxu0 0.0
    %288 = vmatpush2.msra.mxu0 0.0
    %289 = vmatprep.subr.mxu0 0.0
    %290 = vmatpush2.msra.mxu0 0.0
    %291 = vmatprep.subr.mxu0 0.0
    %292 = vmatpush2.msra.mxu0 0.0
    %293 = vmatprep.subr.mxu0 0.0
    %294 = vmatpush2.msra.mxu0 0.0
    %295 = vmatprep.subr.mxu0 0.0
    %296 = vmatpush2.msra.mxu0 0.0
    %297 = vmatprep.subr.mxu0 0.0
    %298 = vmatpush2.msra.mxu0 0.0
    %299 = vmatprep.subr.mxu0 0.0
    %300 = vmatpush2.msra.mxu0 0.0
    %301 = vmatprep.subr.mxu0 0.0
    %302 = vmatpush2.msra.mxu0 0.0
    %303 = vmatprep.subr.mxu0 0.0
    %304 = vmatpush2.msra.mxu0 0.0
    %305 = vmatprep.mubr.f32.mxu0 0.0
    %v306 = vand.u32 %v61, 4294901760
    %v307 = vsub.f32 %v61, %v306
    %308 = vmatmul.mubr.f32.gmra.mxu0 %v307
    %v309 = vpop.f32.mrf.mxu0
    %v310 = vadd.f32 %v230, %v309
    %v311 = vpop.f32.mrf.mxu0
    %312 = vdwg.mxu0
    %313 = vmatprep.subr.mxu0 0.0
    %314 = vmatpush1.msra.mxu0 0.0
    %315 = vmatprep.subr.mxu0 0.0
    %316 = vmatpush1.msra.mxu0 0.0
    %317 = vmatprep.subr.mxu0 0.0
    %318 = vmatpush1.msra.mxu0 0.0
    %319 = vmatprep.subr.mxu0 0.0
    %320 = vmatpush1.msra.mxu0 0.0
    %321 = vmatprep.subr.mxu0 0.0
    %322 = vmatpush1.msra.mxu0 0.0
    %323 = vmatprep.subr.mxu0 0.0
    %324 = vmatpush1.msra.mxu0 0.0
    %325 = vmatprep.subr.mxu0 0.0
    %326 = vmatpush1.msra.mxu0 0.0
    %327 = vmatprep.subr.mxu0 0.0
    %328 = vmatpush1.msra.mxu0 0.0
    %329 = vmatprep.subr.mxu0 0.0
    %330 = vmatpush1.msra.mxu0 0.0
    %331 = vmatprep.subr.mxu0 0.0
    %332 = vmatpush1.msra.mxu0 0.0
    %333 = vmatprep.subr.mxu0 0.0
    %334 = vmatpush1.msra.mxu0 0.0
    %335 = vmatprep.subr.mxu0 0.0
    %336 = vmatpush1.msra.mxu0 0.0
    %337 = vmatprep.subr.mxu0 0.0
    %v338 = vand.u32 %v51, 4294901760
    %339 = vmatpush1.msra.mxu0 %v338
    %340 = vmatprep.subr.mxu0 0.0
    %v341 = vand.u32 %v50, 4294901760
    %342 = vmatpush1.msra.mxu0 %v341
    %343 = vmatprep.subr.mxu0 0.0
    %v344 = vand.u32 %v49, 4294901760
    %345 = vmatpush1.msra.mxu0 %v344
    %346 = vmatprep.subr.mxu0 0.0
    %v347 = vand.u32 %v48, 4294901760
    %348 = vmatpush1.msra.mxu0 %v347
    %349 = vmatprep.subr.mxu0 0.0
    %350 = vmatpush2.msra.mxu0 0.0
    %351 = vmatprep.subr.mxu0 0.0
    %352 = vmatpush2.msra.mxu0 0.0
    %353 = vmatprep.subr.mxu0 0.0
    %354 = vmatpush2.msra.mxu0 0.0
    %355 = vmatprep.subr.mxu0 0.0
    %356 = vmatpush2.msra.mxu0 0.0
    %357 = vmatprep.subr.mxu0 0.0
    %358 = vmatpush2.msra.mxu0 0.0
    %359 = vmatprep.subr.mxu0 0.0
    %360 = vmatpush2.msra.mxu0 0.0
    %361 = vmatprep.subr.mxu0 0.0
    %362 = vmatpush2.msra.mxu0 0.0
    %363 = vmatprep.subr.mxu0 0.0
    %364 = vmatpush2.msra.mxu0 0.0
    %365 = vmatprep.subr.mxu0 0.0
    %366 = vmatpush2.msra.mxu0 0.0
    %367 = vmatprep.subr.mxu0 0.0
    %368 = vmatpush2.msra.mxu0 0.0
    %369 = vmatprep.subr.mxu0 0.0
    %370 = vmatpush2.msra.mxu0 0.0
    %371 = vmatprep.subr.mxu0 0.0
    %372 = vmatpush2.msra.mxu0 0.0
    %373 = vmatprep.subr.mxu0 0.0
    %374 = vmatpush2.msra.mxu0 0.0
    %375 = vmatprep.subr.mxu0 0.0
    %376 = vmatpush2.msra.mxu0 0.0
    %377 = vmatprep.subr.mxu0 0.0
    %378 = vmatpush2.msra.mxu0 0.0
    %379 = vmatprep.subr.mxu0 0.0
    %380 = vmatpush2.msra.mxu0 0.0
    %381 = vmatprep.mubr.f32.mxu0 0.0
    %v382 = vand.u32 %v61, 4294901760
    %v383 = vsub.f32 %v61, %v382
    %v384 = vand.u32 %v383, 4294901760
    %385 = vmatmul.mubr.f32.gmra.mxu0 %v384
    %v386 = vpop.f32.mrf.mxu0
    %v387 = vadd.f32 %v310, %v386
    %v388 = vpop.f32.mrf.mxu0
    %389 = vdwg.mxu0
    %390 = vmatprep.subr.mxu0 0.0
    %391 = vmatpush1.msra.mxu0 0.0
    %392 = vmatprep.subr.mxu0 0.0
    %393 = vmatpush1.msra.mxu0 0.0
    %394 = vmatprep.subr.mxu0 0.0
    %395 = vmatpush1.msra.mxu0 0.0
    %396 = vmatprep.subr.mxu0 0.0
    %397 = vmatpush1.msra.mxu0 0.0
    %398 = vmatprep.subr.mxu0 0.0
    %399 = vmatpush1.msra.mxu0 0.0
    %400 = vmatprep.subr.mxu0 0.0
    %401 = vmatpush1.msra.mxu0 0.0
    %402 = vmatprep.subr.mxu0 0.0
    %403 = vmatpush1.msra.mxu0 0.0
    %404 = vmatprep.subr.mxu0 0.0
    %405 = vmatpush1.msra.mxu0 0.0
    %406 = vmatprep.subr.mxu0 0.0
    %407 = vmatpush1.msra.mxu0 0.0
    %408 = vmatprep.subr.mxu0 0.0
    %409 = vmatpush1.msra.mxu0 0.0
    %410 = vmatprep.subr.mxu0 0.0
    %411 = vmatpush1.msra.mxu0 0.0
    %412 = vmatprep.subr.mxu0 0.0
    %413 = vmatpush1.msra.mxu0 0.0
    %414 = vmatprep.subr.mxu0 0.0
    %v415 = vand.u32 %v51, 4294901760
    %v416 = vsub.f32 %v51, %v415
    %v417 = vand.u32 %v416, 4294901760
    %418 = vmatpush1.msra.mxu0 %v417
    %419 = vmatprep.subr.mxu0 0.0
    %v420 = vand.u32 %v50, 4294901760
    %v421 = vsub.f32 %v50, %v420
    %v422 = vand.u32 %v421, 4294901760
    %423 = vmatpush1.msra.mxu0 %v422
    %424 = vmatprep.subr.mxu0 0.0
    %v425 = vand.u32 %v49, 4294901760
    %v426 = vsub.f32 %v49, %v425
    %v427 = vand.u32 %v426, 4294901760
    %428 = vmatpush1.msra.mxu0 %v427
    %429 = vmatprep.subr.mxu0 0.0
    %v430 = vand.u32 %v48, 4294901760
    %v431 = vsub.f32 %v48, %v430
    %v432 = vand.u32 %v431, 4294901760
    %433 = vmatpush1.msra.mxu0 %v432
    %434 = vmatprep.subr.mxu0 0.0
    %435 = vmatpush2.msra.mxu0 0.0
    %436 = vmatprep.subr.mxu0 0.0
    %437 = vmatpush2.msra.mxu0 0.0
    %438 = vmatprep.subr.mxu0 0.0
    %439 = vmatpush2.msra.mxu0 0.0
    %440 = vmatprep.subr.mxu0 0.0
    %441 = vmatpush2.msra.mxu0 0.0
    %442 = vmatprep.subr.mxu0 0.0
    %443 = vmatpush2.msra.mxu0 0.0
    %444 = vmatprep.subr.mxu0 0.0
    %445 = vmatpush2.msra.mxu0 0.0
    %446 = vmatprep.subr.mxu0 0.0
    %447 = vmatpush2.msra.mxu0 0.0
    %448 = vmatprep.subr.mxu0 0.0
    %449 = vmatpush2.msra.mxu0 0.0
    %450 = vmatprep.subr.mxu0 0.0
    %451 = vmatpush2.msra.mxu0 0.0
    %452 = vmatprep.subr.mxu0 0.0
    %453 = vmatpush2.msra.mxu0 0.0
    %454 = vmatprep.subr.mxu0 0.0
    %455 = vmatpush2.msra.mxu0 0.0
    %456 = vmatprep.subr.mxu0 0.0
    %457 = vmatpush2.msra.mxu0 0.0
    %458 = vmatprep.subr.mxu0 0.0
    %459 = vmatpush2.msra.mxu0 0.0
    %460 = vmatprep.subr.mxu0 0.0
    %461 = vmatpush2.msra.mxu0 0.0
    %462 = vmatprep.subr.mxu0 0.0
    %463 = vmatpush2.msra.mxu0 0.0
    %464 = vmatprep.subr.mxu0 0.0
    %465 = vmatpush2.msra.mxu0 0.0
    %466 = vmatprep.mubr.f32.mxu0 0.0
    %v467 = vand.u32 %v61, 4294901760
    %468 = vmatmul.mubr.f32.gmra.mxu0 %v467
    %v469 = vpop.f32.mrf.mxu0
    %v470 = vadd.f32 %v387, %v469
    %v471 = vpop.f32.mrf.mxu0
    %472 = vdwg.mxu0
    %473 = vmatprep.subr.mxu0 0.0
    %474 = vmatpush1.msra.mxu0 0.0
    %475 = vmatprep.subr.mxu0 0.0
    %476 = vmatpush1.msra.mxu0 0.0
    %477 = vmatprep.subr.mxu0 0.0
    %478 = vmatpush1.msra.mxu0 0.0
    %479 = vmatprep.subr.mxu0 0.0
    %480 = vmatpush1.msra.mxu0 0.0
    %481 = vmatprep.subr.mxu0 0.0
    %482 = vmatpush1.msra.mxu0 0.0
    %483 = vmatprep.subr.mxu0 0.0
    %484 = vmatpush1.msra.mxu0 0.0
    %485 = vmatprep.subr.mxu0 0.0
    %486 = vmatpush1.msra.mxu0 0.0
    %487 = vmatprep.subr.mxu0 0.0
    %488 = vmatpush1.msra.mxu0 0.0
    %489 = vmatprep.subr.mxu0 0.0
    %490 = vmatpush1.msra.mxu0 0.0
    %491 = vmatprep.subr.mxu0 0.0
    %492 = vmatpush1.msra.mxu0 0.0
    %493 = vmatprep.subr.mxu0 0.0
    %494 = vmatpush1.msra.mxu0 0.0
    %495 = vmatprep.subr.mxu0 0.0
    %496 = vmatpush1.msra.mxu0 0.0
    %497 = vmatprep.subr.mxu0 0.0
    %v498 = vand.u32 %v51, 4294901760
    %499 = vmatpush1.msra.mxu0 %v498
    %500 = vmatprep.subr.mxu0 0.0
    %v501 = vand.u32 %v50, 4294901760
    %502 = vmatpush1.msra.mxu0 %v501
    %503 = vmatprep.subr.mxu0 0.0
    %v504 = vand.u32 %v49, 4294901760
    %505 = vmatpush1.msra.mxu0 %v504
    %506 = vmatprep.subr.mxu0 0.0
    %v507 = vand.u32 %v48, 4294901760
    %508 = vmatpush1.msra.mxu0 %v507
    %509 = vmatprep.subr.mxu0 0.0
    %510 = vmatpush2.msra.mxu0 0.0
    %511 = vmatprep.subr.mxu0 0.0
    %512 = vmatpush2.msra.mxu0 0.0
    %513 = vmatprep.subr.mxu0 0.0
    %514 = vmatpush2.msra.mxu0 0.0
    %515 = vmatprep.subr.mxu0 0.0
    %516 = vmatpush2.msra.mxu0 0.0
    %517 = vmatprep.subr.mxu0 0.0
    %518 = vmatpush2.msra.mxu0 0.0
    %519 = vmatprep.subr.mxu0 0.0
    %520 = vmatpush2.msra.mxu0 0.0
    %521 = vmatprep.subr.mxu0 0.0
    %522 = vmatpush2.msra.mxu0 0.0
    %523 = vmatprep.subr.mxu0 0.0
    %524 = vmatpush2.msra.mxu0 0.0
    %525 = vmatprep.subr.mxu0 0.0
    %526 = vmatpush2.msra.mxu0 0.0
    %527 = vmatprep.subr.mxu0 0.0
    %528 = vmatpush2.msra.mxu0 0.0
    %529 = vmatprep.subr.mxu0 0.0
    %530 = vmatpush2.msra.mxu0 0.0
    %531 = vmatprep.subr.mxu0 0.0
    %532 = vmatpush2.msra.mxu0 0.0
    %533 = vmatprep.subr.mxu0 0.0
    %534 = vmatpush2.msra.mxu0 0.0
    %535 = vmatprep.subr.mxu0 0.0
    %536 = vmatpush2.msra.mxu0 0.0
    %537 = vmatprep.subr.mxu0 0.0
    %538 = vmatpush2.msra.mxu0 0.0
    %539 = vmatprep.subr.mxu0 0.0
    %540 = vmatpush2.msra.mxu0 0.0
    %541 = vmatprep.mubr.f32.mxu0 0.0
    %v542 = vand.u32 %v61, 4294901760
    %543 = vmatmul.mubr.f32.gmra.mxu0 %v542
    %v544 = vpop.f32.mrf.mxu0
    %v545 = vadd.f32 %v470, %v544
    %v546 = vpop.f32.mrf.mxu0
    %547 = vdwg.mxu0
    %v548 = vmul.f32 %v545, 0.05
    %v549 = vmax.f32 %v545, %v548
    %v550 = vld [vmem:[%s3] sm:$0x1]
    %v552 = vlaneseq
    %v553 = vshrl.u32 %v552, 7
    %v554 = vsub.s32 0, %v553
    %v555 = vrot.slane %v550, %v554
    %v557 = vmul.f32 %v549, %v555
    %v558 = vsel %vm59, %v557, 0.0
    %559 = vadd.xlane.f32.xlu0 %v558
    %v560 = vpop.xlane.xlu0 %559
    %s561 = sld [smem:[#allocation2]]
    %v562 = vstv %s561
    %v563 = vadd.f32 %v560, %v562
    %vm564 = vcmask 7168
    %565 = vst.msk [vmem:[%s5] sm:$0xff] %vm564, %v563
    // Predicated region
    $region30: #{tpu_custom_call.1} parent=1 // pred_check
      _
    $region31: #{tpu_custom_call.1} parent=1 // pred_check_branch
      %567 = sbr.rel (0) target = $region33
    $region32: #{tpu_custom_call.1} parent=1 // pred_region
      _
    $region33: #{tpu_custom_call.1} parent=1 // pred_fallthru
      _
    // Predicated region
    $region34: #{tpu_custom_call.1} parent=1 // pred_check
      _
    $region35: #{tpu_custom_call.1} parent=1 // pred_check_branch
      %569 = sbr.rel (0) target = $region37
    $region36: #{tpu_custom_call.1} parent=1 // pred_region
      _
    $region37: #{tpu_custom_call.1} parent=1 // pred_fallthru
      _
    %570 = vsyncpa [#allocation4], 1
    %571 = vsyncpa [#allocation6], 1

</llo_original>
